<compile_context>
chip_gen: v7x
topology: tpu7x:2x2x1
jax: 0.10.0
libtpu: 0.0.40
codegen_flags: <defaults>
</compile_context>

<pallas_src>
import functools

import jax
import jax.numpy as jnp
from jax.experimental import pallas as pl
from jax.experimental.pallas import tpu as pltpu

_SUBLANE = 8  # vreg sublane width (second-to-last dim)


def _round_up(n, m):
    return ((n + m - 1) // m) * m


def _mlp_kernel(x_ref, w1_ref, b1_ref, w2_ref, b2_ref, o_ref, *, mxu_dtype):
    x = x_ref[...]
    w1 = w1_ref[...]
    w2 = w2_ref[...]
    if mxu_dtype is not None:
        # bf16 MXU inputs (v6e/v7x fast path); accumulation stays f32.
        x = x.astype(mxu_dtype)
        w1 = w1.astype(mxu_dtype)
        w2 = w2.astype(mxu_dtype)

    # fc1 on the MXU, f32 accumulation.
    h = jnp.dot(x, w1, preferred_element_type=jnp.float32)
    # bias + ReLU on the VPU, in f32.
    h = jnp.maximum(h + b1_ref[...], 0.0)
    if mxu_dtype is not None:
        h = h.astype(mxu_dtype)
    # fc2 on the MXU, f32 accumulation; add bias in f32, cast once on store.
    out = jnp.dot(h, w2, preferred_element_type=jnp.float32)
    o_ref[...] = (out + b2_ref[...]).astype(o_ref.dtype)


def simple_model_forward(x, w1, b1, w2, b2, *, batch_tile=256, mxu_dtype=None):
    """Pallas TPU SimpleModel.forward: out = relu(x @ w1 + b1) @ w2 + b2."""
    B, K = x.shape
    H = w1.shape[1]
    N = w2.shape[1]

    # (1, F) biases: metadata-only reshape (no data movement).  Hoist to
    # parameter-setup time if calling in a tight loop.
    b1_2d = b1.reshape(1, H)
    b2_2d = b2.reshape(1, N)

    kernel = functools.partial(_mlp_kernel, mxu_dtype=mxu_dtype)
    out_shape = jax.ShapeDtypeStruct((B, N), x.dtype)

    itemsize = jnp.dtype(x.dtype).itemsize
    cost = pl.CostEstimate(
        flops=2 * B * (K * H + H * N),
        transcendentals=0,
        bytes_accessed=(x.size + w1.size + b1.size + w2.size + b2.size
                        + B * N) * itemsize,
    )

    # Batch tiling: tb is a multiple of 8 chosen so ceil(B/tb) tiles cover B
    # with at most 7 masked rows.  num_tiles == 1 -> skip the grid entirely.
    n_tiles_target = max(1, pl.cdiv(B, batch_tile))
    tb = min(_round_up(pl.cdiv(B, n_tiles_target), _SUBLANE),
             _round_up(B, _SUBLANE))
    num_tiles = pl.cdiv(B, tb)

    # VMEM budget: double-buffered x/out tiles + weights/biases (the pipeline
    # double-buffers constant-index blocks too).  Capped at 64 MiB (v7x-safe).
    est_vmem = 2 * itemsize * (tb * K + tb * N + K * H + H + H * N + N)
    vmem_limit = int(min(max(2 * est_vmem, 32 * 2**20), 64 * 2**20))

    if num_tiles == 1:
        # Single full-array block, no grid, no pipeline machinery.
        return pl.pallas_call(
            kernel,
            out_shape=out_shape,
            in_specs=[pl.BlockSpec(memory_space=pltpu.MemorySpace.VMEM)] * 5,
            out_specs=pl.BlockSpec(memory_space=pltpu.MemorySpace.VMEM),
            compiler_params=pltpu.CompilerParams(vmem_limit_bytes=vmem_limit),
            cost_estimate=cost,
        )(x, w1, b1_2d, w2, b2_2d)

    # Multi-tile batch: 1-D "parallel" grid (megacore-splittable on v7x);
    # weights/biases use constant index_maps so they stay VMEM-resident.
    return pl.pallas_call(
        kernel,
        out_shape=out_shape,
        grid=(num_tiles,),
        in_specs=[
            pl.BlockSpec((tb, K), lambda i: (i, 0)),   # activations, batch-tiled
            pl.BlockSpec((K, H), lambda i: (0, 0)),    # w1 (resident)
            pl.BlockSpec((1, H), lambda i: (0, 0)),    # b1 (resident)
            pl.BlockSpec((H, N), lambda i: (0, 0)),    # w2 (resident)
            pl.BlockSpec((1, N), lambda i: (0, 0)),    # b2 (resident)
        ],
        out_specs=pl.BlockSpec((tb, N), lambda i: (i, 0)),
        compiler_params=pltpu.CompilerParams(
            dimension_semantics=("parallel",),
            vmem_limit_bytes=vmem_limit),
        cost_estimate=cost,
    )(x, w1, b1_2d, w2, b2_2d)


if __name__ == "__main__":
    # SimpleModel(input_size=32, hidden_size=64, output_size=16), batch=8.
    input_size, hidden_size, output_size = 32, 64, 16
    batch = 8

    key = jax.random.PRNGKey(0)
    kx, kw1, kb1, kw2, kb2 = jax.random.split(key, 5)

    x = jax.random.normal(kx, (batch, input_size), dtype=jnp.float32)

    # Deterministic PyTorch-style uniform init (synthetic values).
    bound1 = 1.0 / (input_size ** 0.5)
    w1 = jax.random.uniform(kw1, (input_size, hidden_size), jnp.float32,
                            -bound1, bound1)
    b1 = jax.random.uniform(kb1, (hidden_size,), jnp.float32, -bound1, bound1)

    bound2 = 1.0 / (hidden_size ** 0.5)
    w2 = jax.random.uniform(kw2, (hidden_size, output_size), jnp.float32,
                            -bound2, bound2)
    b2 = jax.random.uniform(kb2, (output_size,), jnp.float32, -bound2, bound2)

    # Pure-JAX reference: fc1 -> relu -> fc2.
    ref = jnp.maximum(x @ w1 + b1, 0.0) @ w2 + b2

    # 1) f32 path, single tile (no grid) -- the shipped toy shape.
    out = jax.block_until_ready(simple_model_forward(x, w1, b1, w2, b2))
    assert out.shape == (batch, output_size)
    assert jnp.allclose(out, ref, atol=1e-5, rtol=1e-5), "f32 mismatch vs reference"

    # 2) Tiled "parallel"-grid path (multi-tile batch + masked ragged last
    #    tile), still exact f32.
    xb = jnp.concatenate([x] * 5, axis=0)            # batch = 40
    refb = jnp.maximum(xb @ w1 + b1, 0.0) @ w2 + b2
    outb = jax.block_until_ready(
        simple_model_forward(xb, w1, b1, w2, b2, batch_tile=16))
    assert outb.shape == (5 * batch, output_size)
    assert jnp.allclose(outb, refb, atol=1e-5, rtol=1e-5), "tiled mismatch vs reference"

    # 3) bf16 MXU path (recommended on v6e/v7x): f32 accumulation/biases, so
    #    only input-rounding error vs. the f32 reference.
    out_bf16 = jax.block_until_ready(
        simple_model_forward(x, w1, b1, w2, b2, mxu_dtype=jnp.bfloat16))
    assert jnp.allclose(out_bf16, ref, atol=5e-2, rtol=5e-2), "bf16 mismatch vs reference"

    print("KERNEL_OK")
</pallas_src>

<mosaic_0001>
module attributes {stable_mosaic.version = 11 : i64} {
  func.func @_mlp_kernel(%arg0: memref<8x32xf32, #tpu.memory_space<vmem>>, %arg1: memref<32x64xf32, #tpu.memory_space<vmem>>, %arg2: memref<1x64xf32, #tpu.memory_space<vmem>>, %arg3: memref<64x16xf32, #tpu.memory_space<vmem>>, %arg4: memref<1x16xf32, #tpu.memory_space<vmem>>, %arg5: memref<8x16xf32, #tpu.memory_space<vmem>>) attributes {dimension_semantics = [], scalar_prefetch = 0 : i64, scratch_operands = 0 : i64, tpu.core_type = #tpu.core_type<tc>} {
    %c0 = arith.constant 0 : index
    %c0_0 = arith.constant 0 : index
    %0 = vector.load %arg0[%c0, %c0_0] : memref<8x32xf32, #tpu.memory_space<vmem>>, vector<8x32xf32>
    %c0_1 = arith.constant 0 : index
    %c0_2 = arith.constant 0 : index
    %1 = vector.load %arg1[%c0_1, %c0_2] : memref<32x64xf32, #tpu.memory_space<vmem>>, vector<32x64xf32>
    %c0_3 = arith.constant 0 : index
    %c0_4 = arith.constant 0 : index
    %2 = vector.load %arg3[%c0_3, %c0_4] : memref<64x16xf32, #tpu.memory_space<vmem>>, vector<64x16xf32>
    %cst = arith.constant dense<0.000000e+00> : vector<8x64xf32>
    %3 = tpu.matmul %0, %1, %cst {dimension_numbers = #tpu.dot_dimension_numbers<[1], [0], [0], [1], [0, 0, 1, 1], [], []>} : vector<8x32xf32>, vector<32x64xf32>, vector<8x64xf32> -> vector<8x64xf32>
    %c0_5 = arith.constant 0 : index
    %c0_6 = arith.constant 0 : index
    %4 = vector.load %arg2[%c0_5, %c0_6] : memref<1x64xf32, #tpu.memory_space<vmem>>, vector<1x64xf32>
    %5 = vector.broadcast %4 : vector<1x64xf32> to vector<8x64xf32>
    %6 = arith.addf %3, %5 : vector<8x64xf32>
    %cst_7 = arith.constant 0.000000e+00 : f32
    %7 = vector.broadcast %cst_7 : f32 to vector<8x64xf32>
    %8 = arith.maximumf %6, %7 : vector<8x64xf32>
    %cst_8 = arith.constant dense<0.000000e+00> : vector<8x16xf32>
    %9 = tpu.matmul %8, %2, %cst_8 {dimension_numbers = #tpu.dot_dimension_numbers<[1], [0], [0], [1], [0, 0, 1, 1], [], []>} : vector<8x64xf32>, vector<64x16xf32>, vector<8x16xf32> -> vector<8x16xf32>
    %c0_9 = arith.constant 0 : index
    %c0_10 = arith.constant 0 : index
    %10 = vector.load %arg4[%c0_9, %c0_10] : memref<1x16xf32, #tpu.memory_space<vmem>>, vector<1x16xf32>
    %11 = vector.broadcast %10 : vector<1x16xf32> to vector<8x16xf32>
    %12 = arith.addf %9, %11 : vector<8x16xf32>
    %c0_11 = arith.constant 0 : index
    %c0_12 = arith.constant 0 : index
    %13 = vector.load %arg5[%c0_11, %c0_12] : memref<8x16xf32, #tpu.memory_space<vmem>>, vector<8x16xf32>
    tpu.vector_store %arg5[%c0_11, %c0_12], %12 {strides = array<i32>} : memref<8x16xf32, #tpu.memory_space<vmem>>, vector<8x16xf32>,
    return
  }
}

</mosaic_0001>

<llo_original>
// kernel: tpu_custom_call.1
$region0: #{tpu_custom_call.1}
  #allocation0 [shape = 'u32[]', space=smem, size = 0x4, offset = 0x4, fixed_abs, tag = 'smem constant byte address 0x4 - core index']
  #allocation1 [shape = 'u32[144,128]{1,0:T(1,128)}', space=vmem, size = 0x12000, scoped, tag = 'internal scratch']
  %s0 = inlined_call_operand.vmem [shape: f32[8,32], index: 0, kind: input, shape index: {}]
  %s1 = inlined_call_operand.vmem [shape: f32[32,64], index: 1, kind: input, shape index: {}]
  %s2 = inlined_call_operand.vmem [shape: f32[1,64], index: 2, kind: input, shape index: {}]
  %s3 = inlined_call_operand.vmem [shape: f32[64,16], index: 3, kind: input, shape index: {}]
  %s4 = inlined_call_operand.vmem [shape: f32[1,16], index: 4, kind: input, shape index: {}]
  %s5 = inlined_call_operand.hbm [shape: f32[8,16], index: 5, kind: output, shape index: {}]
  %s6 = sld [smem:[#allocation0]]
  $region30: #{tpu_custom_call.1} parent=0
    _
  %s8 = ssub.s32 1, %s6
  %s9 = scalar_select 0, %s8, %s6
  $region1: #{tpu_custom_call.1} parent=0
    #allocation2 [shape = 'u8[4096]{0}', space=vmem, size = 0x1000, scoped, tag = 'output window, operand 0, single buffered']
    #allocation3 [shape = 's32[1]{0}', space=sflag, size = 0x4, scoped, tag = 'scoped memory for tpu_custom_call.1']
    %10 = vsyncpa [#allocation3], 0
    // Predicated region
    $region2: #{tpu_custom_call.1} parent=1 // pred_check
      _
    $region3: #{tpu_custom_call.1} parent=1 // pred_check_branch
      %12 = sbr.rel (0) target = $region5
    $region4: #{tpu_custom_call.1} parent=1 // pred_region
      _
    $region5: #{tpu_custom_call.1} parent=1 // pred_fallthru
      _
    // Predicated region
    $region6: #{tpu_custom_call.1} parent=1 // pred_check
      _
    $region7: #{tpu_custom_call.1} parent=1 // pred_check_branch
      %14 = sbr.rel (0) target = $region9
    $region8: #{tpu_custom_call.1} parent=1 // pred_region
      _
    $region9: #{tpu_custom_call.1} parent=1 // pred_fallthru
      _
    // Predicated region
    $region10: #{tpu_custom_call.1} parent=1 // pred_check
      _
    $region11: #{tpu_custom_call.1} parent=1 // pred_check_branch
      %16 = sbr.rel (0) target = $region13
    $region12: #{tpu_custom_call.1} parent=1 // pred_region
      _
    $region13: #{tpu_custom_call.1} parent=1 // pred_fallthru
      _
    // Predicated region
    $region14: #{tpu_custom_call.1} parent=1 // pred_check
      _
    $region15: #{tpu_custom_call.1} parent=1 // pred_check_branch
      %18 = sbr.rel (0) target = $region17
    $region16: #{tpu_custom_call.1} parent=1 // pred_region
      _
    $region17: #{tpu_custom_call.1} parent=1 // pred_fallthru
      _
    // Predicated region
    $region18: #{tpu_custom_call.1} parent=1 // pred_check
      _
    $region19: #{tpu_custom_call.1} parent=1 // pred_check_branch
      %20 = sbr.rel (0) target = $region21
    $region20: #{tpu_custom_call.1} parent=1 // pred_region
      _
    $region21: #{tpu_custom_call.1} parent=1 // pred_fallthru
      _
    %v21 = vld [vmem:[%s0] sm:$0xff]
    %v22 = vld [vmem:[%s1] sm:$0xff]
    %v23 = vld [vmem:[%s1 + $0x8] sm:$0xff]
    %v24 = vld [vmem:[%s1 + $0x10] sm:$0xff]
    %v25 = vld [vmem:[%s1 + $0x18] sm:$0xff]
    %v26 = vld [vmem:[%s3] sm:$0xff]
    %v27 = vld [vmem:[%s3 + $0x8] sm:$0xff]
    %v28 = vld [vmem:[%s3 + $0x10] sm:$0xff]
    %v29 = vld [vmem:[%s3 + $0x18] sm:$0xff]
    %v30 = vld [vmem:[%s3 + $0x20] sm:$0xff]
    %v31 = vld [vmem:[%s3 + $0x28] sm:$0xff]
    %v32 = vld [vmem:[%s3 + $0x30] sm:$0xff]
    %v33 = vld [vmem:[%s3 + $0x38] sm:$0xff]
    %v34 = vld [vmem:[%s2] sm:$0x1]
    %v36 = vlaneseq
    %v37 = vshrl.u32 %v36, 7
    %v38 = vsub.s32 0, %v37
    %v39 = vrot.slane %v34, %v38
    %vm41 = vcmask 261120
    %v43 = vsel %vm41, %v21, 0
    %45 = vmatprep.subr.mxu0 0.0
    %46 = vmatpush1.msra.mxu0 %v22
    %47 = vmatprep.subr.mxu0 0.0
    %48 = vmatpush1.msra.mxu0 %v23
    %49 = vmatprep.subr.mxu0 0.0
    %50 = vmatpush1.msra.mxu0 %v24
    %51 = vmatprep.subr.mxu0 0.0
    %52 = vmatpush1.msra.mxu0 %v25
    %53 = vmatprep.subr.mxu0 0.0
    %54 = vmatpush1.msra.mxu0 0.0
    %55 = vmatprep.subr.mxu0 0.0
    %56 = vmatpush1.msra.mxu0 0.0
    %57 = vmatprep.subr.mxu0 0.0
    %58 = vmatpush1.msra.mxu0 0.0
    %59 = vmatprep.subr.mxu0 0.0
    %60 = vmatpush1.msra.mxu0 0.0
    %61 = vmatprep.subr.mxu0 0.0
    %62 = vmatpush1.msra.mxu0 0.0
    %63 = vmatprep.subr.mxu0 0.0
    %64 = vmatpush1.msra.mxu0 0.0
    %65 = vmatprep.subr.mxu0 0.0
    %66 = vmatpush1.msra.mxu0 0.0
    %67 = vmatprep.subr.mxu0 0.0
    %68 = vmatpush1.msra.mxu0 0.0
    %69 = vmatprep.subr.mxu0 0.0
    %70 = vmatpush1.msra.mxu0 0.0
    %71 = vmatprep.subr.mxu0 0.0
    %72 = vmatpush1.msra.mxu0 0.0
    %73 = vmatprep.subr.mxu0 0.0
    %74 = vmatpush1.msra.mxu0 0.0
    %75 = vmatprep.subr.mxu0 0.0
    %76 = vmatpush1.msra.mxu0 0.0
    %77 = vmatprep.subr.mxu0 0.0
    %78 = vmatpush1.msra.mxu0 0.0
    %79 = vmatprep.subr.mxu0 0.0
    %80 = vmatpush1.msra.mxu0 0.0
    %81 = vmatprep.subr.mxu0 0.0
    %82 = vmatpush1.msra.mxu0 0.0
    %83 = vmatprep.subr.mxu0 0.0
    %84 = vmatpush1.msra.mxu0 0.0
    %85 = vmatprep.subr.mxu0 0.0
    %86 = vmatpush1.msra.mxu0 0.0
    %87 = vmatprep.subr.mxu0 0.0
    %88 = vmatpush1.msra.mxu0 0.0
    %89 = vmatprep.subr.mxu0 0.0
    %90 = vmatpush1.msra.mxu0 0.0
    %91 = vmatprep.subr.mxu0 0.0
    %92 = vmatpush1.msra.mxu0 0.0
    %93 = vmatprep.subr.mxu0 0.0
    %94 = vmatpush1.msra.mxu0 0.0
    %95 = vmatprep.subr.mxu0 0.0
    %96 = vmatpush1.msra.mxu0 0.0
    %97 = vmatprep.subr.mxu0 0.0
    %98 = vmatpush1.msra.mxu0 0.0
    %99 = vmatprep.subr.mxu0 0.0
    %100 = vmatpush1.msra.mxu0 0.0
    %101 = vmatprep.subr.mxu0 0.0
    %102 = vmatpush1.msra.mxu0 0.0
    %103 = vmatprep.subr.mxu0 0.0
    %104 = vmatpush1.msra.mxu0 0.0
    %105 = vmatprep.subr.mxu0 0.0
    %106 = vmatpush1.msra.mxu0 0.0
    %107 = vmatprep.subr.mxu0 0.0
    %108 = vmatpush1.msra.mxu0 0.0
    %109 = vmatprep.mubr.f32.mxu0 0.0
    %110 = vmatmul.mubr.f32.gmra.mrb[0].mxu0 %v43
    %v111 = vpop.f32.mrb[0].mxu0
    %v112 = vadd.f32 %v39, %v111
    %v113 = vpop.f32.mrb[0].mxu0
    %114 = vdwg.mxu0
    %v115 = vmax.f32 %v112, 0.0
    %v116 = vld [vmem:[%s4] sm:$0x1]
    %v118 = vlaneseq
    %v119 = vshrl.u32 %v118, 7
    %v120 = vsub.s32 0, %v119
    %v121 = vrot.slane %v116, %v120
    %vm123 = vcmask 523264
    %v125 = vsel %vm123, %v115, 0
    %127 = vmatprep.subr.mxu0 0.0
    %128 = vmatpush1.msra.mxu0 %v26
    %129 = vmatprep.subr.mxu0 0.0
    %130 = vmatpush1.msra.mxu0 %v27
    %131 = vmatprep.subr.mxu0 0.0
    %132 = vmatpush1.msra.mxu0 %v28
    %133 = vmatprep.subr.mxu0 0.0
    %134 = vmatpush1.msra.mxu0 %v29
    %135 = vmatprep.subr.mxu0 0.0
    %136 = vmatpush1.msra.mxu0 %v30
    %137 = vmatprep.subr.mxu0 0.0
    %138 = vmatpush1.msra.mxu0 %v31
    %139 = vmatprep.subr.mxu0 0.0
    %140 = vmatpush1.msra.mxu0 %v32
    %141 = vmatprep.subr.mxu0 0.0
    %142 = vmatpush1.msra.mxu0 %v33
    %143 = vmatprep.subr.mxu0 0.0
    %144 = vmatpush1.msra.mxu0 0.0
    %145 = vmatprep.subr.mxu0 0.0
    %146 = vmatpush1.msra.mxu0 0.0
    %147 = vmatprep.subr.mxu0 0.0
    %148 = vmatpush1.msra.mxu0 0.0
    %149 = vmatprep.subr.mxu0 0.0
    %150 = vmatpush1.msra.mxu0 0.0
    %151 = vmatprep.subr.mxu0 0.0
    %152 = vmatpush1.msra.mxu0 0.0
    %153 = vmatprep.subr.mxu0 0.0
    %154 = vmatpush1.msra.mxu0 0.0
    %155 = vmatprep.subr.mxu0 0.0
    %156 = vmatpush1.msra.mxu0 0.0
    %157 = vmatprep.subr.mxu0 0.0
    %158 = vmatpush1.msra.mxu0 0.0
    %159 = vmatprep.subr.mxu0 0.0
    %160 = vmatpush1.msra.mxu0 0.0
    %161 = vmatprep.subr.mxu0 0.0
    %162 = vmatpush1.msra.mxu0 0.0
    %163 = vmatprep.subr.mxu0 0.0
    %164 = vmatpush1.msra.mxu0 0.0
    %165 = vmatprep.subr.mxu0 0.0
    %166 = vmatpush1.msra.mxu0 0.0
    %167 = vmatprep.subr.mxu0 0.0
    %168 = vmatpush1.msra.mxu0 0.0
    %169 = vmatprep.subr.mxu0 0.0
    %170 = vmatpush1.msra.mxu0 0.0
    %171 = vmatprep.subr.mxu0 0.0
    %172 = vmatpush1.msra.mxu0 0.0
    %173 = vmatprep.subr.mxu0 0.0
    %174 = vmatpush1.msra.mxu0 0.0
    %175 = vmatprep.subr.mxu0 0.0
    %176 = vmatpush1.msra.mxu0 0.0
    %177 = vmatprep.subr.mxu0 0.0
    %178 = vmatpush1.msra.mxu0 0.0
    %179 = vmatprep.subr.mxu0 0.0
    %180 = vmatpush1.msra.mxu0 0.0
    %181 = vmatprep.subr.mxu0 0.0
    %182 = vmatpush1.msra.mxu0 0.0
    %183 = vmatprep.subr.mxu0 0.0
    %184 = vmatpush1.msra.mxu0 0.0
    %185 = vmatprep.subr.mxu0 0.0
    %186 = vmatpush1.msra.mxu0 0.0
    %187 = vmatprep.subr.mxu0 0.0
    %188 = vmatpush1.msra.mxu0 0.0
    %189 = vmatprep.subr.mxu0 0.0
    %190 = vmatpush1.msra.mxu0 0.0
    %191 = vmatprep.mubr.f32.mxu0 0.0
    %192 = vmatmul.mubr.f32.gmra.mrb[0].mxu0 %v125
    %v193 = vpop.f32.mrb[0].mxu0
    %v194 = vadd.f32 %v121, %v193
    %v195 = vpop.f32.mrb[0].mxu0
    %196 = vdwg.mxu0
    %vm197 = vcmask 130048
    %198 = vst.msk [vmem:[#allocation2] sm:$0xff] %vm197, %v194
    // Predicated region
    $region22: #{tpu_custom_call.1} parent=1 // pred_check
      _
    $region23: #{tpu_custom_call.1} parent=1 // pred_check_branch
      %200 = sbr.rel (0) target = $region25
    $region24: #{tpu_custom_call.1} parent=1 // pred_region
      %s202 = ssub.s32 128, 128
      %203 = vsyncadd [#allocation3], %s202
      %s205 = sshll.u32 [#allocation2], 4
      %s206 = int_to_ptr.vmem [resolvable:$true] %s205
      %208 = dma.vmem_to_hbm [thread:$0]  %s206, 128, %s5, [#allocation3]
    $region25: #{tpu_custom_call.1} parent=1 // pred_fallthru
      _
    // Predicated region
    $region26: #{tpu_custom_call.1} parent=1 // pred_check
      _
    $region27: #{tpu_custom_call.1} parent=1 // pred_check_branch
      %210 = sbr.rel (0) target = $region29
    $region28: #{tpu_custom_call.1} parent=1 // pred_region
      %211 = dma.done [#allocation3], 128
    $region29: #{tpu_custom_call.1} parent=1 // pred_fallthru
      _
    %212 = vsyncpa [#allocation3], 1

</llo_original>
